<compile_context>
chip_gen: v7x
topology: tpu7x:2x2x1
jax: 0.10.0
libtpu: 0.0.40
codegen_flags: <defaults>
</compile_context>

<pallas_src>
import numpy as np
import jax
import jax.numpy as jnp
from jax.experimental import pallas as pl
from jax.experimental.pallas import tpu as pltpu

NEG_SLOPE = 0.01   # F.leaky_relu default negative_slope
BN_EPS = 1e-5      # nn.BatchNorm2d default eps
LANE = 128


def _transition_kernel(params_ref, w_ref, x_ref, o_ref):
    # params_ref: (2, C) f32   row 0 = BN scale, row 1 = BN shift
    # w_ref:      (C, Co_pad)  1x1 conv weight with the 0.25 pool factor folded in
    # x_ref:      (4, TILE, C) axis 0 enumerates the 2x2 pooling window
    scale = params_ref[0:1, :]
    shift = params_ref[1:2, :]

    def bn_act(k):
        a = x_ref[k].astype(jnp.float32) * scale + shift
        # leaky_relu(a) == max(a, slope*a) for slope < 1 (drops the compare).
        return jnp.maximum(a, NEG_SLOPE * a)

    # 2x2 average pool == sum over the leading window axis; 1/4 is in w_ref.
    p = bn_act(0) + bn_act(1) + bn_act(2) + bn_act(3)            # (TILE, C) f32

    # 1x1 conv == channel matmul on the MXU, f32 accumulation.
    o_ref[...] = jnp.dot(p.astype(w_ref.dtype), w_ref[...],
                         preferred_element_type=jnp.float32).astype(o_ref.dtype)


def _round_up(x, m):
    return ((x + m - 1) // m) * m


def _vmem_capacity_bytes():
    # Generation-aware budget (64 MiB/TC on v7x, 128 MiB on v5e/v6e); fall back
    # to the conservative 64 MiB if the query is unavailable.
    try:
        return int(pltpu.get_tpu_info().vmem_capacity_bytes)
    except Exception:
        return 64 << 20


def _pick_tile(m, c, x_itemsize, co_pad):
    """Largest aligned M-tile that keeps double-buffered blocks in budget."""
    vmem = _vmem_capacity_bytes()
    budget = min(max(vmem // 3, 8 << 20), 40 << 20)   # headroom for scratch/weight
    # Per tile-row: double-buffered x block (4 window elems) + double-buffered
    # f32 output block.
    per_row = 2 * (4 * c * x_itemsize) + 2 * (co_pad * 4)
    cap = max(8, min(2048, (budget // per_row) // 8 * 8))
    return int(min(cap, _round_up(m, 8)))


def transition_forward(x_nchw, gamma, beta, run_mean, run_var, conv_w,
                       mxu_dtype=None):
    """Fused eval-mode BN -> leaky_relu -> 1x1 conv -> 2x2 avg-pool.

    x_nchw: (N, C, H, W); conv_w: (Co, C) (1x1 kernel squeezed).
    Returns (N, Co, H//2, W//2) float32, matching the PyTorch module.
    """
    N, C, H, W = x_nchw.shape
    Co = conv_w.shape[0]
    Ho, Wo = H // 2, W // 2
    M = N * Ho * Wo

    if mxu_dtype is None:
        mxu_dtype = jnp.bfloat16 if x_nchw.dtype == jnp.bfloat16 else jnp.float32

    # Fold eval-mode BatchNorm into per-channel scale/shift, packed (2, C).
    inv_std = 1.0 / jnp.sqrt(run_var.astype(jnp.float32) + BN_EPS)
    scale = gamma.astype(jnp.float32) * inv_std
    shift = beta.astype(jnp.float32) - run_mean.astype(jnp.float32) * scale
    params = jnp.stack([scale, shift], axis=0)                       # (2, C) f32

    # Conv weight as (C, Co) with the 1/4 pool factor folded in.  Pad Co to a
    # lane-dense multiple of 128 so output stores are unmasked vst.
    co_pad = _round_up(Co, LANE)
    w_t = (conv_w.T.astype(jnp.float32) * 0.25).astype(mxu_dtype)
    if co_pad != Co:
        w_t = jnp.pad(w_t, ((0, 0), (0, co_pad - Co)))

    # For bf16 MXU operands round activations to bf16 *before* the layout pass,
    # so the transpose / input DMA moves half the bytes.
    x_src = x_nchw[:, :, :2 * Ho, :2 * Wo]
    if mxu_dtype == jnp.bfloat16 and x_src.dtype != jnp.bfloat16:
        x_src = x_src.astype(jnp.bfloat16)

    # Layout pass: NCHW -> (4, M, C), window-major channels-last.  With
    # allow_input_fusion on this operand, XLA may fuse the transpose into the
    # pallas_call input DMA instead of materializing x_win in HBM.
    # TODO(synk): if the producing layer emits NHWC / window-major directly,
    # this transpose (and the output one below) disappears entirely.
    x_win = jnp.transpose(
        x_src.reshape(N, C, Ho, 2, Wo, 2), (3, 5, 0, 2, 4, 1)
    ).reshape(4, M, C)

    x_itemsize = jnp.dtype(x_win.dtype).itemsize
    tile = _pick_tile(M, C, x_itemsize, co_pad)
    m_pad = _round_up(M, tile)
    if m_pad != M:
        x_win = jnp.pad(x_win, ((0, 0), (0, m_pad - M), (0, 0)))
    grid = (m_pad // tile,)

    # Explicit VMEM limit: double-buffered x + out blocks, weight, params, 2x
    # headroom; always below the per-generation physical capacity.
    needed = (2 * 4 * tile * C * x_itemsize + 2 * tile * co_pad * 4
              + C * co_pad * jnp.dtype(mxu_dtype).itemsize + 2 * C * 4)
    vmem_cap = _vmem_capacity_bytes()
    vmem_limit = int(min(max(2 * needed, 32 << 20),
                         max(vmem_cap - (16 << 20), 32 << 20)))

    out_flat = pl.pallas_call(
        _transition_kernel,
        out_shape=jax.ShapeDtypeStruct((m_pad, co_pad), jnp.float32),
        grid=grid,
        in_specs=[
            pl.BlockSpec((2, C), lambda i: (0, 0)),            # BN scale/shift
            pl.BlockSpec((C, co_pad), lambda i: (0, 0)),       # conv weight
            pl.BlockSpec((4, tile, C), lambda i: (0, i, 0)),   # x window tiles
        ],
        out_specs=pl.BlockSpec((tile, co_pad), lambda i: (i, 0)),
        compiler_params=pltpu.CompilerParams(
            dimension_semantics=("parallel",),
            vmem_limit_bytes=vmem_limit,
            allow_input_fusion=[False, False, True]),
    )(params, w_t, x_win)

    out = out_flat[:M, :Co]
    # (N*Ho*Wo, Co) -> (N, Co, Ho, Wo) to match the PyTorch module's contract.
    # TODO(synk): drop this transpose if downstream consumers accept NHWC.
    return jnp.transpose(out.reshape(N, Ho, Wo, Co), (0, 3, 1, 2))


def _reference(x, gamma, beta, run_mean, run_var, conv_w):
    """Pure-JAX reference of the PyTorch forward (eval-mode BN)."""
    N, C, H, W = x.shape
    xn = (x - run_mean[None, :, None, None]) / jnp.sqrt(run_var + BN_EPS)[None, :, None, None]
    xn = xn * gamma[None, :, None, None] + beta[None, :, None, None]
    a = jnp.where(xn > 0, xn, NEG_SLOPE * xn)
    z = jnp.einsum("nchw,oc->nohw", a, conv_w)
    return z.reshape(N, conv_w.shape[0], H // 2, 2, W // 2, 2).mean(axis=(3, 5))


if __name__ == "__main__":
    # Small shapes consistent with the module: N=2, C=4, H=W=16, Co=2.
    N, C, H, W = 2, 4, 16, 16
    Co = 2

    key = jax.random.PRNGKey(0)
    kx, kg, kb, km, kv, kw = jax.random.split(key, 6)

    x = jax.random.normal(kx, (N, C, H, W), dtype=jnp.float32)

    # Deterministic synthetic parameters (BatchNorm2d + 1x1 Conv2d, no bias).
    gamma = 1.0 + 0.1 * jax.random.normal(kg, (C,), dtype=jnp.float32)
    beta = 0.1 * jax.random.normal(kb, (C,), dtype=jnp.float32)
    run_mean = 0.1 * jax.random.normal(km, (C,), dtype=jnp.float32)
    run_var = 1.0 + 0.1 * jnp.abs(jax.random.normal(kv, (C,), dtype=jnp.float32))
    conv_w = jax.random.normal(kw, (Co, C), dtype=jnp.float32) / np.sqrt(C)

    ref = _reference(x, gamma, beta, run_mean, run_var, conv_w)

    # f32 activation path (matches PyTorch f32 numerics tightly).
    out = jax.block_until_ready(
        transition_forward(x, gamma, beta, run_mean, run_var, conv_w))
    np.testing.assert_allclose(np.asarray(out), np.asarray(ref), rtol=1e-5, atol=1e-5)
    assert out.shape == (N, Co, H // 2, W // 2)

    # bf16 MXU-operand path (activations rounded to bf16 before BN; f32 accum).
    out_bf16 = jax.block_until_ready(
        transition_forward(x, gamma, beta, run_mean, run_var, conv_w,
                           mxu_dtype=jnp.bfloat16))
    np.testing.assert_allclose(np.asarray(out_bf16), np.asarray(ref),
                               rtol=5e-2, atol=5e-2)

    print("KERNEL_OK")
</pallas_src>

<mosaic_0001>
module attributes {stable_mosaic.version = 11 : i64} {
  func.func @_transition_kernel(%arg0: i32, %arg1: memref<2x4xf32, #tpu.memory_space<vmem>>, %arg2: memref<4x128xf32, #tpu.memory_space<vmem>>, %arg3: memref<4x128x4xf32, #tpu.memory_space<vmem>>, %arg4: memref<128x128xf32, #tpu.memory_space<vmem>>) attributes {dimension_semantics = [#tpu.dimension_semantics<parallel>], iteration_bounds = array<i64: 1>, scalar_prefetch = 0 : i64, scratch_operands = 0 : i64, tpu.core_type = #tpu.core_type<tc>, window_params = [{pipeline_mode = #tpu.pipeline_mode<synchronous>, transform_indices = @transform_0, window_bounds = array<i64: 2, 4>}, {pipeline_mode = #tpu.pipeline_mode<synchronous>, transform_indices = @transform_1, window_bounds = array<i64: 4, 128>}, {transform_indices = @transform_2, window_bounds = array<i64: 4, 128, 4>}, {transform_indices = @transform_3, window_bounds = array<i64: 128, 128>}]} {
    %c0 = arith.constant 0 : index
    %c0_0 = arith.constant 0 : index
    %0 = vector.load %arg1[%c0, %c0_0] : memref<2x4xf32, #tpu.memory_space<vmem>>, vector<1x4xf32>
    %c1 = arith.constant 1 : index
    %c0_1 = arith.constant 0 : index
    %1 = vector.load %arg1[%c1, %c0_1] : memref<2x4xf32, #tpu.memory_space<vmem>>, vector<1x4xf32>
    %c0_2 = arith.constant 0 : index
    %c0_3 = arith.constant 0 : index
    %c0_4 = arith.constant 0 : index
    %2 = vector.load %arg3[%c0_2, %c0_3, %c0_4] : memref<4x128x4xf32, #tpu.memory_space<vmem>>, vector<1x128x4xf32>
    %3 = vector.shape_cast %2 : vector<1x128x4xf32> to vector<128x4xf32>
    %4 = vector.broadcast %0 : vector<1x4xf32> to vector<128x4xf32>
    %5 = arith.mulf %3, %4 : vector<128x4xf32>
    %6 = vector.broadcast %1 : vector<1x4xf32> to vector<128x4xf32>
    %7 = arith.addf %5, %6 : vector<128x4xf32>
    %cst = arith.constant 0.00999999977 : f32
    %8 = vector.broadcast %cst : f32 to vector<128x4xf32>
    %9 = arith.mulf %8, %7 : vector<128x4xf32>
    %10 = arith.maximumf %7, %9 : vector<128x4xf32>
    %c1_5 = arith.constant 1 : index
    %c0_6 = arith.constant 0 : index
    %c0_7 = arith.constant 0 : index
    %11 = vector.load %arg3[%c1_5, %c0_6, %c0_7] : memref<4x128x4xf32, #tpu.memory_space<vmem>>, vector<1x128x4xf32>
    %12 = vector.shape_cast %11 : vector<1x128x4xf32> to vector<128x4xf32>
    %13 = vector.broadcast %0 : vector<1x4xf32> to vector<128x4xf32>
    %14 = arith.mulf %12, %13 : vector<128x4xf32>
    %15 = vector.broadcast %1 : vector<1x4xf32> to vector<128x4xf32>
    %16 = arith.addf %14, %15 : vector<128x4xf32>
    %cst_8 = arith.constant 0.00999999977 : f32
    %17 = vector.broadcast %cst_8 : f32 to vector<128x4xf32>
    %18 = arith.mulf %17, %16 : vector<128x4xf32>
    %19 = arith.maximumf %16, %18 : vector<128x4xf32>
    %20 = arith.addf %10, %19 : vector<128x4xf32>
    %c2 = arith.constant 2 : index
    %c0_9 = arith.constant 0 : index
    %c0_10 = arith.constant 0 : index
    %21 = vector.load %arg3[%c2, %c0_9, %c0_10] : memref<4x128x4xf32, #tpu.memory_space<vmem>>, vector<1x128x4xf32>
    %22 = vector.shape_cast %21 : vector<1x128x4xf32> to vector<128x4xf32>
    %23 = vector.broadcast %0 : vector<1x4xf32> to vector<128x4xf32>
    %24 = arith.mulf %22, %23 : vector<128x4xf32>
    %25 = vector.broadcast %1 : vector<1x4xf32> to vector<128x4xf32>
    %26 = arith.addf %24, %25 : vector<128x4xf32>
    %cst_11 = arith.constant 0.00999999977 : f32
    %27 = vector.broadcast %cst_11 : f32 to vector<128x4xf32>
    %28 = arith.mulf %27, %26 : vector<128x4xf32>
    %29 = arith.maximumf %26, %28 : vector<128x4xf32>
    %30 = arith.addf %20, %29 : vector<128x4xf32>
    %c3 = arith.constant 3 : index
    %c0_12 = arith.constant 0 : index
    %c0_13 = arith.constant 0 : index
    %31 = vector.load %arg3[%c3, %c0_12, %c0_13] : memref<4x128x4xf32, #tpu.memory_space<vmem>>, vector<1x128x4xf32>
    %32 = vector.shape_cast %31 : vector<1x128x4xf32> to vector<128x4xf32>
    %33 = vector.broadcast %0 : vector<1x4xf32> to vector<128x4xf32>
    %34 = arith.mulf %32, %33 : vector<128x4xf32>
    %35 = vector.broadcast %1 : vector<1x4xf32> to vector<128x4xf32>
    %36 = arith.addf %34, %35 : vector<128x4xf32>
    %cst_14 = arith.constant 0.00999999977 : f32
    %37 = vector.broadcast %cst_14 : f32 to vector<128x4xf32>
    %38 = arith.mulf %37, %36 : vector<128x4xf32>
    %39 = arith.maximumf %36, %38 : vector<128x4xf32>
    %40 = arith.addf %30, %39 : vector<128x4xf32>
    %c0_15 = arith.constant 0 : index
    %c0_16 = arith.constant 0 : index
    %41 = vector.load %arg2[%c0_15, %c0_16] : memref<4x128xf32, #tpu.memory_space<vmem>>, vector<4x128xf32>
    %cst_17 = arith.constant dense<0.000000e+00> : vector<128x128xf32>
    %42 = tpu.matmul %40, %41, %cst_17 {dimension_numbers = #tpu.dot_dimension_numbers<[1], [0], [0], [1], [0, 0, 1, 1], [], []>} : vector<128x4xf32>, vector<4x128xf32>, vector<128x128xf32> -> vector<128x128xf32>
    %c0_18 = arith.constant 0 : index
    %c0_19 = arith.constant 0 : index
    %43 = vector.load %arg4[%c0_18, %c0_19] : memref<128x128xf32, #tpu.memory_space<vmem>>, vector<128x128xf32>
    tpu.vector_store %arg4[%c0_18, %c0_19], %42 {strides = array<i32>} : memref<128x128xf32, #tpu.memory_space<vmem>>, vector<128x128xf32>,
    return
  }
  func.func @transform_0(%arg0: i32) -> (i32, i32) {
    %c0_i32 = arith.constant 0 : i32
    %c0_i32_0 = arith.constant 0 : i32
    %c0_i32_1 = arith.constant 0 : i32
    return %c0_i32, %c0_i32_0 : i32, i32
  }
  func.func @transform_1(%arg0: i32) -> (i32, i32) {
    %c0_i32 = arith.constant 0 : i32
    %c0_i32_0 = arith.constant 0 : i32
    %c0_i32_1 = arith.constant 0 : i32
    return %c0_i32, %c0_i32_0 : i32, i32
  }
  func.func @transform_2(%arg0: i32) -> (i32, i32, i32) {
    %c0_i32 = arith.constant 0 : i32
    %c0_i32_0 = arith.constant 0 : i32
    %c0_i32_1 = arith.constant 0 : i32
    return %c0_i32, %arg0, %c0_i32_0 : i32, i32, i32
  }
  func.func @transform_3(%arg0: i32) -> (i32, i32) {
    %c0_i32 = arith.constant 0 : i32
    %c0_i32_0 = arith.constant 0 : i32
    return %arg0, %c0_i32 : i32, i32
  }
}

</mosaic_0001>

<llo_original>
// kernel: tpu_custom_call.1
$region0: #{tpu_custom_call.1}
  #allocation0 [shape = 'u32[]', space=smem, size = 0x4, offset = 0x4, fixed_abs, tag = 'smem constant byte address 0x4 - core index']
  #allocation1 [shape = 'u32[144,128]{1,0:T(1,128)}', space=vmem, size = 0x12000, scoped, tag = 'internal scratch']
  %s0 = inlined_call_operand.vmem [shape: f32[2,4], index: 0, kind: input, shape index: {}]
  %s1 = inlined_call_operand.vmem [shape: f32[4,128], index: 1, kind: input, shape index: {}]
  %s2 = inlined_call_operand.vmem [shape: f32[4,128,4], index: 2, kind: input, shape index: {}]
  %s3 = inlined_call_operand.hbm [shape: f32[128,128], index: 3, kind: output, shape index: {}]
  %s4 = sld [smem:[#allocation0]]
  $region22: #{tpu_custom_call.1} parent=0
    _
  %s6 = ssub.s32 1, %s4
  %s7 = scalar_select 0, %s6, %s4
  $region1: #{tpu_custom_call.1} parent=0
    #allocation2 [shape = 'u8[65536]{0}', space=vmem, size = 0x10000, scoped, tag = 'output window, operand 0, single buffered']
    #allocation3 [shape = 's32[1]{0}', space=sflag, size = 0x4, scoped, tag = 'scoped memory for tpu_custom_call.1']
    %8 = vsyncpa [#allocation3], 0
    // Predicated region
    $region2: #{tpu_custom_call.1} parent=1 // pred_check
      _
    $region3: #{tpu_custom_call.1} parent=1 // pred_check_branch
      %10 = sbr.rel (0) target = $region5
    $region4: #{tpu_custom_call.1} parent=1 // pred_region
      _
    $region5: #{tpu_custom_call.1} parent=1 // pred_fallthru
      _
    // Predicated region
    $region6: #{tpu_custom_call.1} parent=1 // pred_check
      _
    $region7: #{tpu_custom_call.1} parent=1 // pred_check_branch
      %12 = sbr.rel (0) target = $region9
    $region8: #{tpu_custom_call.1} parent=1 // pred_region
      _
    $region9: #{tpu_custom_call.1} parent=1 // pred_fallthru
      _
    // Predicated region
    $region10: #{tpu_custom_call.1} parent=1 // pred_check
      _
    $region11: #{tpu_custom_call.1} parent=1 // pred_check_branch
      %14 = sbr.rel (0) target = $region13
    $region12: #{tpu_custom_call.1} parent=1 // pred_region
      _
    $region13: #{tpu_custom_call.1} parent=1 // pred_fallthru
      _
    %v15 = vld [vmem:[%s0] sm:$0x1]
    %v16 = vld [vmem:[%s0 + $0x1] sm:$0x1]
    %v17 = vld [vmem:[%s2] sm:$0xff]
    %v18 = vld [vmem:[%s2 + $0x8] sm:$0xff]
    %v19 = vld [vmem:[%s2 + $0x10] sm:$0xff]
    %v20 = vld [vmem:[%s2 + $0x18] sm:$0xff]
    %v21 = vld [vmem:[%s2 + $0x20] sm:$0xff]
    %v22 = vld [vmem:[%s2 + $0x28] sm:$0xff]
    %v23 = vld [vmem:[%s2 + $0x30] sm:$0xff]
    %v24 = vld [vmem:[%s2 + $0x38] sm:$0xff]
    %v25 = vld [vmem:[%s2 + $0x40] sm:$0xff]
    %v26 = vld [vmem:[%s2 + $0x48] sm:$0xff]
    %v27 = vld [vmem:[%s2 + $0x50] sm:$0xff]
    %v28 = vld [vmem:[%s2 + $0x58] sm:$0xff]
    %v29 = vld [vmem:[%s2 + $0x60] sm:$0xff]
    %v30 = vld [vmem:[%s2 + $0x68] sm:$0xff]
    %v31 = vld [vmem:[%s2 + $0x70] sm:$0xff]
    %v32 = vld [vmem:[%s2 + $0x78] sm:$0xff]
    %v33 = vlaneseq
    %v34 = vshrl.u32 %v33, 7
    %v35 = vsub.s32 0, %v34
    %v36 = vrot.slane %v15, %v35
    %v37 = vmul.f32 %v17, %v36
    %v38 = vmul.f32 %v18, %v36
    %v39 = vmul.f32 %v19, %v36
    %v40 = vmul.f32 %v20, %v36
    %v41 = vmul.f32 %v21, %v36
    %v42 = vmul.f32 %v22, %v36
    %v43 = vmul.f32 %v23, %v36
    %v44 = vmul.f32 %v24, %v36
    %v45 = vmul.f32 %v25, %v36
    %v46 = vmul.f32 %v26, %v36
    %v47 = vmul.f32 %v27, %v36
    %v48 = vmul.f32 %v28, %v36
    %v49 = vmul.f32 %v29, %v36
    %v50 = vmul.f32 %v30, %v36
    %v51 = vmul.f32 %v31, %v36
    %v52 = vmul.f32 %v32, %v36
    %v53 = vlaneseq
    %v54 = vshrl.u32 %v53, 7
    %v55 = vsub.s32 0, %v54
    %v56 = vrot.slane %v16, %v55
    %v57 = vadd.f32 %v37, %v56
    %v58 = vadd.f32 %v38, %v56
    %v59 = vadd.f32 %v39, %v56
    %v60 = vadd.f32 %v40, %v56
    %v61 = vadd.f32 %v41, %v56
    %v62 = vadd.f32 %v42, %v56
    %v63 = vadd.f32 %v43, %v56
    %v64 = vadd.f32 %v44, %v56
    %v65 = vadd.f32 %v45, %v56
    %v66 = vadd.f32 %v46, %v56
    %v67 = vadd.f32 %v47, %v56
    %v68 = vadd.f32 %v48, %v56
    %v69 = vadd.f32 %v49, %v56
    %v70 = vadd.f32 %v50, %v56
    %v71 = vadd.f32 %v51, %v56
    %v72 = vadd.f32 %v52, %v56
    %v73 = vmul.f32 %v57, 0.01
    %v74 = vmul.f32 %v58, 0.01
    %v75 = vmul.f32 %v59, 0.01
    %v76 = vmul.f32 %v60, 0.01
    %v77 = vmul.f32 %v61, 0.01
    %v78 = vmul.f32 %v62, 0.01
    %v79 = vmul.f32 %v63, 0.01
    %v80 = vmul.f32 %v64, 0.01
    %v81 = vmul.f32 %v65, 0.01
    %v82 = vmul.f32 %v66, 0.01
    %v83 = vmul.f32 %v67, 0.01
    %v84 = vmul.f32 %v68, 0.01
    %v85 = vmul.f32 %v69, 0.01
    %v86 = vmul.f32 %v70, 0.01
    %v87 = vmul.f32 %v71, 0.01
    %v88 = vmul.f32 %v72, 0.01
    %v89 = vmax.f32 %v57, %v73
    %v90 = vmax.f32 %v58, %v74
    %v91 = vmax.f32 %v59, %v75
    %v92 = vmax.f32 %v60, %v76
    %v93 = vmax.f32 %v61, %v77
    %v94 = vmax.f32 %v62, %v78
    %v95 = vmax.f32 %v63, %v79
    %v96 = vmax.f32 %v64, %v80
    %v97 = vmax.f32 %v65, %v81
    %v98 = vmax.f32 %v66, %v82
    %v99 = vmax.f32 %v67, %v83
    %v100 = vmax.f32 %v68, %v84
    %v101 = vmax.f32 %v69, %v85
    %v102 = vmax.f32 %v70, %v86
    %v103 = vmax.f32 %v71, %v87
    %v104 = vmax.f32 %v72, %v88
    %s105 = scalar_lea.vmem %s2, 128
    %v106 = vld [vmem:[%s105] sm:$0xff]
    %v107 = vld [vmem:[%s105 + $0x8] sm:$0xff]
    %v108 = vld [vmem:[%s105 + $0x10] sm:$0xff]
    %v109 = vld [vmem:[%s105 + $0x18] sm:$0xff]
    %v110 = vld [vmem:[%s105 + $0x20] sm:$0xff]
    %v111 = vld [vmem:[%s105 + $0x28] sm:$0xff]
    %v112 = vld [vmem:[%s105 + $0x30] sm:$0xff]
    %v113 = vld [vmem:[%s105 + $0x38] sm:$0xff]
    %v114 = vld [vmem:[%s105 + $0x40] sm:$0xff]
    %v115 = vld [vmem:[%s105 + $0x48] sm:$0xff]
    %v116 = vld [vmem:[%s105 + $0x50] sm:$0xff]
    %v117 = vld [vmem:[%s105 + $0x58] sm:$0xff]
    %v118 = vld [vmem:[%s105 + $0x60] sm:$0xff]
    %v119 = vld [vmem:[%s105 + $0x68] sm:$0xff]
    %v120 = vld [vmem:[%s105 + $0x70] sm:$0xff]
    %v121 = vld [vmem:[%s105 + $0x78] sm:$0xff]
    %v122 = vmul.f32 %v106, %v36
    %v123 = vmul.f32 %v107, %v36
    %v124 = vmul.f32 %v108, %v36
    %v125 = vmul.f32 %v109, %v36
    %v126 = vmul.f32 %v110, %v36
    %v127 = vmul.f32 %v111, %v36
    %v128 = vmul.f32 %v112, %v36
    %v129 = vmul.f32 %v113, %v36
    %v130 = vmul.f32 %v114, %v36
    %v131 = vmul.f32 %v115, %v36
    %v132 = vmul.f32 %v116, %v36
    %v133 = vmul.f32 %v117, %v36
    %v134 = vmul.f32 %v118, %v36
    %v135 = vmul.f32 %v119, %v36
    %v136 = vmul.f32 %v120, %v36
    %v137 = vmul.f32 %v121, %v36
    %v138 = vadd.f32 %v122, %v56
    %v139 = vadd.f32 %v123, %v56
    %v140 = vadd.f32 %v124, %v56
    %v141 = vadd.f32 %v125, %v56
    %v142 = vadd.f32 %v126, %v56
    %v143 = vadd.f32 %v127, %v56
    %v144 = vadd.f32 %v128, %v56
    %v145 = vadd.f32 %v129, %v56
    %v146 = vadd.f32 %v130, %v56
    %v147 = vadd.f32 %v131, %v56
    %v148 = vadd.f32 %v132, %v56
    %v149 = vadd.f32 %v133, %v56
    %v150 = vadd.f32 %v134, %v56
    %v151 = vadd.f32 %v135, %v56
    %v152 = vadd.f32 %v136, %v56
    %v153 = vadd.f32 %v137, %v56
    %v154 = vmul.f32 %v138, 0.01
    %v155 = vmul.f32 %v139, 0.01
    %v156 = vmul.f32 %v140, 0.01
    %v157 = vmul.f32 %v141, 0.01
    %v158 = vmul.f32 %v142, 0.01
    %v159 = vmul.f32 %v143, 0.01
    %v160 = vmul.f32 %v144, 0.01
    %v161 = vmul.f32 %v145, 0.01
    %v162 = vmul.f32 %v146, 0.01
    %v163 = vmul.f32 %v147, 0.01
    %v164 = vmul.f32 %v148, 0.01
    %v165 = vmul.f32 %v149, 0.01
    %v166 = vmul.f32 %v150, 0.01
    %v167 = vmul.f32 %v151, 0.01
    %v168 = vmul.f32 %v152, 0.01
    %v169 = vmul.f32 %v153, 0.01
    %v170 = vmax.f32 %v138, %v154
    %v171 = vmax.f32 %v139, %v155
    %v172 = vmax.f32 %v140, %v156
    %v173 = vmax.f32 %v141, %v157
    %v174 = vmax.f32 %v142, %v158
    %v175 = vmax.f32 %v143, %v159
    %v176 = vmax.f32 %v144, %v160
    %v177 = vmax.f32 %v145, %v161
    %v178 = vmax.f32 %v146, %v162
    %v179 = vmax.f32 %v147, %v163
    %v180 = vmax.f32 %v148, %v164
    %v181 = vmax.f32 %v149, %v165
    %v182 = vmax.f32 %v150, %v166
    %v183 = vmax.f32 %v151, %v167
    %v184 = vmax.f32 %v152, %v168
    %v185 = vmax.f32 %v153, %v169
    %v186 = vadd.f32 %v89, %v170
    %v187 = vadd.f32 %v90, %v171
    %v188 = vadd.f32 %v91, %v172
    %v189 = vadd.f32 %v92, %v173
    %v190 = vadd.f32 %v93, %v174
    %v191 = vadd.f32 %v94, %v175
    %v192 = vadd.f32 %v95, %v176
    %v193 = vadd.f32 %v96, %v177
    %v194 = vadd.f32 %v97, %v178
    %v195 = vadd.f32 %v98, %v179
    %v196 = vadd.f32 %v99, %v180
    %v197 = vadd.f32 %v100, %v181
    %v198 = vadd.f32 %v101, %v182
    %v199 = vadd.f32 %v102, %v183
    %v200 = vadd.f32 %v103, %v184
    %v201 = vadd.f32 %v104, %v185
    %s202 = scalar_lea.vmem %s2, 256
    %v203 = vld [vmem:[%s202] sm:$0xff]
    %v204 = vld [vmem:[%s202 + $0x8] sm:$0xff]
    %v205 = vld [vmem:[%s202 + $0x10] sm:$0xff]
    %v206 = vld [vmem:[%s202 + $0x18] sm:$0xff]
    %v207 = vld [vmem:[%s202 + $0x20] sm:$0xff]
    %v208 = vld [vmem:[%s202 + $0x28] sm:$0xff]
    %v209 = vld [vmem:[%s202 + $0x30] sm:$0xff]
    %v210 = vld [vmem:[%s202 + $0x38] sm:$0xff]
    %v211 = vld [vmem:[%s202 + $0x40] sm:$0xff]
    %v212 = vld [vmem:[%s202 + $0x48] sm:$0xff]
    %v213 = vld [vmem:[%s202 + $0x50] sm:$0xff]
    %v214 = vld [vmem:[%s202 + $0x58] sm:$0xff]
    %v215 = vld [vmem:[%s202 + $0x60] sm:$0xff]
    %v216 = vld [vmem:[%s202 + $0x68] sm:$0xff]
    %v217 = vld [vmem:[%s202 + $0x70] sm:$0xff]
    %v218 = vld [vmem:[%s202 + $0x78] sm:$0xff]
    %v219 = vmul.f32 %v203, %v36
    %v220 = vmul.f32 %v204, %v36
    %v221 = vmul.f32 %v205, %v36
    %v222 = vmul.f32 %v206, %v36
    %v223 = vmul.f32 %v207, %v36
    %v224 = vmul.f32 %v208, %v36
    %v225 = vmul.f32 %v209, %v36
    %v226 = vmul.f32 %v210, %v36
    %v227 = vmul.f32 %v211, %v36
    %v228 = vmul.f32 %v212, %v36
    %v229 = vmul.f32 %v213, %v36
    %v230 = vmul.f32 %v214, %v36
    %v231 = vmul.f32 %v215, %v36
    %v232 = vmul.f32 %v216, %v36
    %v233 = vmul.f32 %v217, %v36
    %v234 = vmul.f32 %v218, %v36
    %v235 = vadd.f32 %v219, %v56
    %v236 = vadd.f32 %v220, %v56
    %v237 = vadd.f32 %v221, %v56
    %v238 = vadd.f32 %v222, %v56
    %v239 = vadd.f32 %v223, %v56
    %v240 = vadd.f32 %v224, %v56
    %v241 = vadd.f32 %v225, %v56
    %v242 = vadd.f32 %v226, %v56
    %v243 = vadd.f32 %v227, %v56
    %v244 = vadd.f32 %v228, %v56
    %v245 = vadd.f32 %v229, %v56
    %v246 = vadd.f32 %v230, %v56
    %v247 = vadd.f32 %v231, %v56
    %v248 = vadd.f32 %v232, %v56
    %v249 = vadd.f32 %v233, %v56
    %v250 = vadd.f32 %v234, %v56
    %v251 = vmul.f32 %v235, 0.01
    %v252 = vmul.f32 %v236, 0.01
    %v253 = vmul.f32 %v237, 0.01
    %v254 = vmul.f32 %v238, 0.01
    %v255 = vmul.f32 %v239, 0.01
    %v256 = vmul.f32 %v240, 0.01
    %v257 = vmul.f32 %v241, 0.01
    %v258 = vmul.f32 %v242, 0.01
    %v259 = vmul.f32 %v243, 0.01
    %v260 = vmul.f32 %v244, 0.01
    %v261 = vmul.f32 %v245, 0.01
    %v262 = vmul.f32 %v246, 0.01
    %v263 = vmul.f32 %v247, 0.01
    %v264 = vmul.f32 %v248, 0.01
    %v265 = vmul.f32 %v249, 0.01
    %v266 = vmul.f32 %v250, 0.01
    %v267 = vmax.f32 %v235, %v251
    %v268 = vmax.f32 %v236, %v252
    %v269 = vmax.f32 %v237, %v253
    %v270 = vmax.f32 %v238, %v254
    %v271 = vmax.f32 %v239, %v255
    %v272 = vmax.f32 %v240, %v256
    %v273 = vmax.f32 %v241, %v257
    %v274 = vmax.f32 %v242, %v258
    %v275 = vmax.f32 %v243, %v259
    %v276 = vmax.f32 %v244, %v260
    %v277 = vmax.f32 %v245, %v261
    %v278 = vmax.f32 %v246, %v262
    %v279 = vmax.f32 %v247, %v263
    %v280 = vmax.f32 %v248, %v264
    %v281 = vmax.f32 %v249, %v265
    %v282 = vmax.f32 %v250, %v266
    %v283 = vadd.f32 %v186, %v267
    %v284 = vadd.f32 %v187, %v268
    %v285 = vadd.f32 %v188, %v269
    %v286 = vadd.f32 %v189, %v270
    %v287 = vadd.f32 %v190, %v271
    %v288 = vadd.f32 %v191, %v272
    %v289 = vadd.f32 %v192, %v273
    %v290 = vadd.f32 %v193, %v274
    %v291 = vadd.f32 %v194, %v275
    %v292 = vadd.f32 %v195, %v276
    %v293 = vadd.f32 %v196, %v277
    %v294 = vadd.f32 %v197, %v278
    %v295 = vadd.f32 %v198, %v279
    %v296 = vadd.f32 %v199, %v280
    %v297 = vadd.f32 %v200, %v281
    %v298 = vadd.f32 %v201, %v282
    %s299 = scalar_lea.vmem %s2, 384
    %v300 = vld [vmem:[%s299] sm:$0xff]
    %v301 = vld [vmem:[%s299 + $0x8] sm:$0xff]
    %v302 = vld [vmem:[%s299 + $0x10] sm:$0xff]
    %v303 = vld [vmem:[%s299 + $0x18] sm:$0xff]
    %v304 = vld [vmem:[%s299 + $0x20] sm:$0xff]
    %v305 = vld [vmem:[%s299 + $0x28] sm:$0xff]
    %v306 = vld [vmem:[%s299 + $0x30] sm:$0xff]
    %v307 = vld [vmem:[%s299 + $0x38] sm:$0xff]
    %v308 = vld [vmem:[%s299 + $0x40] sm:$0xff]
    %v309 = vld [vmem:[%s299 + $0x48] sm:$0xff]
    %v310 = vld [vmem:[%s299 + $0x50] sm:$0xff]
    %v311 = vld [vmem:[%s299 + $0x58] sm:$0xff]
    %v312 = vld [vmem:[%s299 + $0x60] sm:$0xff]
    %v313 = vld [vmem:[%s299 + $0x68] sm:$0xff]
    %v314 = vld [vmem:[%s299 + $0x70] sm:$0xff]
    %v315 = vld [vmem:[%s299 + $0x78] sm:$0xff]
    %v316 = vmul.f32 %v300, %v36
    %v317 = vmul.f32 %v301, %v36
    %v318 = vmul.f32 %v302, %v36
    %v319 = vmul.f32 %v303, %v36
    %v320 = vmul.f32 %v304, %v36
    %v321 = vmul.f32 %v305, %v36
    %v322 = vmul.f32 %v306, %v36
    %v323 = vmul.f32 %v307, %v36
    %v324 = vmul.f32 %v308, %v36
    %v325 = vmul.f32 %v309, %v36
    %v326 = vmul.f32 %v310, %v36
    %v327 = vmul.f32 %v311, %v36
    %v328 = vmul.f32 %v312, %v36
    %v329 = vmul.f32 %v313, %v36
    %v330 = vmul.f32 %v314, %v36
    %v331 = vmul.f32 %v315, %v36
    %v332 = vadd.f32 %v316, %v56
    %v333 = vadd.f32 %v317, %v56
    %v334 = vadd.f32 %v318, %v56
    %v335 = vadd.f32 %v319, %v56
    %v336 = vadd.f32 %v320, %v56
    %v337 = vadd.f32 %v321, %v56
    %v338 = vadd.f32 %v322, %v56
    %v339 = vadd.f32 %v323, %v56
    %v340 = vadd.f32 %v324, %v56
    %v341 = vadd.f32 %v325, %v56
    %v342 = vadd.f32 %v326, %v56
    %v343 = vadd.f32 %v327, %v56
    %v344 = vadd.f32 %v328, %v56
    %v345 = vadd.f32 %v329, %v56
    %v346 = vadd.f32 %v330, %v56
    %v347 = vadd.f32 %v331, %v56
    %v348 = vmul.f32 %v332, 0.01
    %v349 = vmul.f32 %v333, 0.01
    %v350 = vmul.f32 %v334, 0.01
    %v351 = vmul.f32 %v335, 0.01
    %v352 = vmul.f32 %v336, 0.01
    %v353 = vmul.f32 %v337, 0.01
    %v354 = vmul.f32 %v338, 0.01
    %v355 = vmul.f32 %v339, 0.01
    %v356 = vmul.f32 %v340, 0.01
    %v357 = vmul.f32 %v341, 0.01
    %v358 = vmul.f32 %v342, 0.01
    %v359 = vmul.f32 %v343, 0.01
    %v360 = vmul.f32 %v344, 0.01
    %v361 = vmul.f32 %v345, 0.01
    %v362 = vmul.f32 %v346, 0.01
    %v363 = vmul.f32 %v347, 0.01
    %v364 = vmax.f32 %v332, %v348
    %v365 = vmax.f32 %v333, %v349
    %v366 = vmax.f32 %v334, %v350
    %v367 = vmax.f32 %v335, %v351
    %v368 = vmax.f32 %v336, %v352
    %v369 = vmax.f32 %v337, %v353
    %v370 = vmax.f32 %v338, %v354
    %v371 = vmax.f32 %v339, %v355
    %v372 = vmax.f32 %v340, %v356
    %v373 = vmax.f32 %v341, %v357
    %v374 = vmax.f32 %v342, %v358
    %v375 = vmax.f32 %v343, %v359
    %v376 = vmax.f32 %v344, %v360
    %v377 = vmax.f32 %v345, %v361
    %v378 = vmax.f32 %v346, %v362
    %v379 = vmax.f32 %v347, %v363
    %v380 = vadd.f32 %v283, %v364
    %v381 = vadd.f32 %v284, %v365
    %v382 = vadd.f32 %v285, %v366
    %v383 = vadd.f32 %v286, %v367
    %v384 = vadd.f32 %v287, %v368
    %v385 = vadd.f32 %v288, %v369
    %v386 = vadd.f32 %v289, %v370
    %v387 = vadd.f32 %v290, %v371
    %v388 = vadd.f32 %v291, %v372
    %v389 = vadd.f32 %v292, %v373
    %v390 = vadd.f32 %v293, %v374
    %v391 = vadd.f32 %v294, %v375
    %v392 = vadd.f32 %v295, %v376
    %v393 = vadd.f32 %v296, %v377
    %v394 = vadd.f32 %v297, %v378
    %v395 = vadd.f32 %v298, %v379
    %v396 = vld [vmem:[%s1] sm:$0xf]
    %vm397 = vcmask 31744
    %v399 = vsel %vm397, %v380, 0
    %v402 = vsel %vm397, %v381, 0
    %v405 = vsel %vm397, %v382, 0
    %v408 = vsel %vm397, %v383, 0
    %v411 = vsel %vm397, %v384, 0
    %v414 = vsel %vm397, %v385, 0
    %v417 = vsel %vm397, %v386, 0
    %v420 = vsel %vm397, %v387, 0
    %v423 = vsel %vm397, %v388, 0
    %v426 = vsel %vm397, %v389, 0
    %v429 = vsel %vm397, %v390, 0
    %v432 = vsel %vm397, %v391, 0
    %v435 = vsel %vm397, %v392, 0
    %v438 = vsel %vm397, %v393, 0
    %v441 = vsel %vm397, %v394, 0
    %v444 = vsel %vm397, %v395, 0
    %vm446 = vcmask 1043456
    %v448 = vsel %vm446, %v396, 0
    %450 = vmatprep.subr.mxu0 0.0
    %451 = vmatpush1.msra.mxu0 %v448
    %452 = vmatprep.subr.mxu0 0.0
    %453 = vmatpush1.msra.mxu0 0.0
    %454 = vmatprep.subr.mxu0 0.0
    %455 = vmatpush1.msra.mxu0 0.0
    %456 = vmatprep.subr.mxu0 0.0
    %457 = vmatpush1.msra.mxu0 0.0
    %458 = vmatprep.subr.mxu0 0.0
    %459 = vmatpush1.msra.mxu0 0.0
    %460 = vmatprep.subr.mxu0 0.0
    %461 = vmatpush1.msra.mxu0 0.0
    %462 = vmatprep.subr.mxu0 0.0
    %463 = vmatpush1.msra.mxu0 0.0
    %464 = vmatprep.subr.mxu0 0.0
    %465 = vmatpush1.msra.mxu0 0.0
    %466 = vmatprep.subr.mxu0 0.0
    %467 = vmatpush1.msra.mxu0 0.0
    %468 = vmatprep.subr.mxu0 0.0
    %469 = vmatpush1.msra.mxu0 0.0
    %470 = vmatprep.subr.mxu0 0.0
    %471 = vmatpush1.msra.mxu0 0.0
    %472 = vmatprep.subr.mxu0 0.0
    %473 = vmatpush1.msra.mxu0 0.0
    %474 = vmatprep.subr.mxu0 0.0
    %475 = vmatpush1.msra.mxu0 0.0
    %476 = vmatprep.subr.mxu0 0.0
    %477 = vmatpush1.msra.mxu0 0.0
    %478 = vmatprep.subr.mxu0 0.0
    %479 = vmatpush1.msra.mxu0 0.0
    %480 = vmatprep.subr.mxu0 0.0
    %481 = vmatpush1.msra.mxu0 0.0
    %482 = vmatprep.subr.mxu0 0.0
    %483 = vmatpush1.msra.mxu0 0.0
    %484 = vmatprep.subr.mxu0 0.0
    %485 = vmatpush1.msra.mxu0 0.0
    %486 = vmatprep.subr.mxu0 0.0
    %487 = vmatpush1.msra.mxu0 0.0
    %488 = vmatprep.subr.mxu0 0.0
    %489 = vmatpush1.msra.mxu0 0.0
    %490 = vmatprep.subr.mxu0 0.0
    %491 = vmatpush1.msra.mxu0 0.0
    %492 = vmatprep.subr.mxu0 0.0
    %493 = vmatpush1.msra.mxu0 0.0
    %494 = vmatprep.subr.mxu0 0.0
    %495 = vmatpush1.msra.mxu0 0.0
    %496 = vmatprep.subr.mxu0 0.0
    %497 = vmatpush1.msra.mxu0 0.0
    %498 = vmatprep.subr.mxu0 0.0
    %499 = vmatpush1.msra.mxu0 0.0
    %500 = vmatprep.subr.mxu0 0.0
    %501 = vmatpush1.msra.mxu0 0.0
    %502 = vmatprep.subr.mxu0 0.0
    %503 = vmatpush1.msra.mxu0 0.0
    %504 = vmatprep.subr.mxu0 0.0
    %505 = vmatpush1.msra.mxu0 0.0
    %506 = vmatprep.subr.mxu0 0.0
    %507 = vmatpush1.msra.mxu0 0.0
    %508 = vmatprep.subr.mxu0 0.0
    %509 = vmatpush1.msra.mxu0 0.0
    %510 = vmatprep.subr.mxu0 0.0
    %511 = vmatpush1.msra.mxu0 0.0
    %512 = vmatprep.subr.mxu0 0.0
    %513 = vmatpush1.msra.mxu0 0.0
    %514 = vmatprep.mubr.f32.mxu0 0.0
    %515 = vmatmul.mubr.f32.gmra.mrb[0].mxu0 %v399
    %v516 = vpop.f32.mrb[0].mxu0
    %v517 = vadd.f32 0.0, %v516
    %v518 = vpop.f32.mrb[0].mxu0
    %519 = vmatprep.mubr.f32.mxu0 0.0
    %520 = vmatmul.mubr.f32.gmra.mrb[0].mxu0 %v402
    %v521 = vpop.f32.mrb[0].mxu0
    %v522 = vadd.f32 0.0, %v521
    %v523 = vpop.f32.mrb[0].mxu0
    %524 = vmatprep.mubr.f32.mxu0 0.0
    %525 = vmatmul.mubr.f32.gmra.mrb[0].mxu0 %v405
    %v526 = vpop.f32.mrb[0].mxu0
    %v527 = vadd.f32 0.0, %v526
    %v528 = vpop.f32.mrb[0].mxu0
    %529 = vmatprep.mubr.f32.mxu0 0.0
    %530 = vmatmul.mubr.f32.gmra.mrb[0].mxu0 %v408
    %v531 = vpop.f32.mrb[0].mxu0
    %v532 = vadd.f32 0.0, %v531
    %v533 = vpop.f32.mrb[0].mxu0
    %534 = vmatprep.mubr.f32.mxu0 0.0
    %535 = vmatmul.mubr.f32.gmra.mrb[0].mxu0 %v411
    %v536 = vpop.f32.mrb[0].mxu0
    %v537 = vadd.f32 0.0, %v536
    %v538 = vpop.f32.mrb[0].mxu0
    %539 = vmatprep.mubr.f32.mxu0 0.0
    %540 = vmatmul.mubr.f32.gmra.mrb[0].mxu0 %v414
    %v541 = vpop.f32.mrb[0].mxu0
    %v542 = vadd.f32 0.0, %v541
    %v543 = vpop.f32.mrb[0].mxu0
    %544 = vmatprep.mubr.f32.mxu0 0.0
    %545 = vmatmul.mubr.f32.gmra.mrb[0].mxu0 %v417
    %v546 = vpop.f32.mrb[0].mxu0
    %v547 = vadd.f32 0.0, %v546
    %v548 = vpop.f32.mrb[0].mxu0
    %549 = vmatprep.mubr.f32.mxu0 0.0
    %550 = vmatmul.mubr.f32.gmra.mrb[0].mxu0 %v420
    %v551 = vpop.f32.mrb[0].mxu0
    %v552 = vadd.f32 0.0, %v551
    %v553 = vpop.f32.mrb[0].mxu0
    %554 = vmatprep.mubr.f32.mxu0 0.0
    %555 = vmatmul.mubr.f32.gmra.mrb[0].mxu0 %v423
    %v556 = vpop.f32.mrb[0].mxu0
    %v557 = vadd.f32 0.0, %v556
    %v558 = vpop.f32.mrb[0].mxu0
    %559 = vmatprep.mubr.f32.mxu0 0.0
    %560 = vmatmul.mubr.f32.gmra.mrb[0].mxu0 %v426
    %v561 = vpop.f32.mrb[0].mxu0
    %v562 = vadd.f32 0.0, %v561
    %v563 = vpop.f32.mrb[0].mxu0
    %564 = vmatprep.mubr.f32.mxu0 0.0
    %565 = vmatmul.mubr.f32.gmra.mrb[0].mxu0 %v429
    %v566 = vpop.f32.mrb[0].mxu0
    %v567 = vadd.f32 0.0, %v566
    %v568 = vpop.f32.mrb[0].mxu0
    %569 = vmatprep.mubr.f32.mxu0 0.0
    %570 = vmatmul.mubr.f32.gmra.mrb[0].mxu0 %v432
    %v571 = vpop.f32.mrb[0].mxu0
    %v572 = vadd.f32 0.0, %v571
    %v573 = vpop.f32.mrb[0].mxu0
    %574 = vmatprep.mubr.f32.mxu0 0.0
    %575 = vmatmul.mubr.f32.gmra.mrb[0].mxu0 %v435
    %v576 = vpop.f32.mrb[0].mxu0
    %v577 = vadd.f32 0.0, %v576
    %v578 = vpop.f32.mrb[0].mxu0
    %579 = vmatprep.mubr.f32.mxu0 0.0
    %580 = vmatmul.mubr.f32.gmra.mrb[0].mxu0 %v438
    %v581 = vpop.f32.mrb[0].mxu0
    %v582 = vadd.f32 0.0, %v581
    %v583 = vpop.f32.mrb[0].mxu0
    %584 = vmatprep.mubr.f32.mxu0 0.0
    %585 = vmatmul.mubr.f32.gmra.mrb[0].mxu0 %v441
    %v586 = vpop.f32.mrb[0].mxu0
    %v587 = vadd.f32 0.0, %v586
    %v588 = vpop.f32.mrb[0].mxu0
    %589 = vmatprep.mubr.f32.mxu0 0.0
    %590 = vmatmul.mubr.f32.gmra.mrb[0].mxu0 %v444
    %v591 = vpop.f32.mrb[0].mxu0
    %v592 = vadd.f32 0.0, %v591
    %v593 = vpop.f32.mrb[0].mxu0
    %594 = vdwg.mxu0
    %595 = vst [vmem:[#allocation2] sm:$0xff] %v517
    %596 = vst [vmem:[#allocation2 + $0x8] sm:$0xff] %v522
    %597 = vst [vmem:[#allocation2 + $0x10] sm:$0xff] %v527
    %598 = vst [vmem:[#allocation2 + $0x18] sm:$0xff] %v532
    %599 = vst [vmem:[#allocation2 + $0x20] sm:$0xff] %v537
    %600 = vst [vmem:[#allocation2 + $0x28] sm:$0xff] %v542
    %601 = vst [vmem:[#allocation2 + $0x30] sm:$0xff] %v547
    %602 = vst [vmem:[#allocation2 + $0x38] sm:$0xff] %v552
    %603 = vst [vmem:[#allocation2 + $0x40] sm:$0xff] %v557
    %604 = vst [vmem:[#allocation2 + $0x48] sm:$0xff] %v562
    %605 = vst [vmem:[#allocation2 + $0x50] sm:$0xff] %v567
    %606 = vst [vmem:[#allocation2 + $0x58] sm:$0xff] %v572
    %607 = vst [vmem:[#allocation2 + $0x60] sm:$0xff] %v577
    %608 = vst [vmem:[#allocation2 + $0x68] sm:$0xff] %v582
    %609 = vst [vmem:[#allocation2 + $0x70] sm:$0xff] %v587
    %610 = vst [vmem:[#allocation2 + $0x78] sm:$0xff] %v592
    // Predicated region
    $region14: #{tpu_custom_call.1} parent=1 // pred_check
      _
    $region15: #{tpu_custom_call.1} parent=1 // pred_check_branch
      %612 = sbr.rel (0) target = $region17
    $region16: #{tpu_custom_call.1} parent=1 // pred_region
      %s614 = ssub.s32 2048, 2048
      %615 = vsyncadd [#allocation3], %s614
      %s616 = sshll.u32 [#allocation2], 4
      %s617 = int_to_ptr.vmem [resolvable:$true] %s616
      %622 = dma.vmem_to_hbm [thread:$0]  %s617, 2048, %s3, [#allocation3], 128, 128, 8
    $region17: #{tpu_custom_call.1} parent=1 // pred_fallthru
      _
    // Predicated region
    $region18: #{tpu_custom_call.1} parent=1 // pred_check
      _
    $region19: #{tpu_custom_call.1} parent=1 // pred_check_branch
      %624 = sbr.rel (0) target = $region21
    $region20: #{tpu_custom_call.1} parent=1 // pred_region
      %625 = dma.done [#allocation3], 2048
    $region21: #{tpu_custom_call.1} parent=1 // pred_fallthru
      _
    %626 = vsyncpa [#allocation3], 1

</llo_original>
